<compile_context>
chip_gen: v5e
topology: v5e:2x2
jax: 0.10.0
libtpu: 0.0.40
codegen_flags: <defaults>
</compile_context>

<pallas_src>
import functools

import jax
import jax.numpy as jnp
from jax.experimental import pallas as pl
from jax.experimental.pallas import tpu as pltpu


# -----------------------------------------------------------------------------
# Kernel
# -----------------------------------------------------------------------------
def _mlp_encoder_kernel(*refs, n_hidden):
    """refs = (x, [w_i, b_i]*n_hidden, w_head, b_head, out)

    w_i:    (in_i, out_i)          -- pre-transposed at param prep
    b_i:    (1, out_i)
    w_head: (hidden[-1], out_pad)  -- [linear_target ; linear_sens], zero-padded
                                      to a 128-lane multiple
    b_head: (1, out_pad)
    out:    (tb, out_pad)          -- lane-dense output slab
    """
    x_ref = refs[0]
    hid_refs = refs[1:1 + 2 * n_hidden]
    wh_ref = refs[1 + 2 * n_hidden]
    bh_ref = refs[2 + 2 * n_hidden]
    out_ref = refs[-1]

    h = x_ref[...]

    # Hidden Linear + ReLU stack (unrolled at trace time; n_hidden is static).
    # Canonical (M,K)x(K,N) contraction -> MXU-native, no XLU transpose.
    for i in range(n_hidden):
        w = hid_refs[2 * i][...]
        b = hid_refs[2 * i + 1][...]
        h = jnp.dot(h, w, preferred_element_type=jnp.float32) + b
        h = jnp.maximum(h, 0.0)

    # Fused heads: one MXU matmul, one lane-dense contiguous store.
    out_ref[...] = (
        jnp.dot(h, wh_ref[...], preferred_element_type=jnp.float32) + bh_ref[...]
    )


# -----------------------------------------------------------------------------
# One-time parameter preparation (NOT per forward call)
# -----------------------------------------------------------------------------
def prepare_params(params, z_dim):
    """params = (w1, b1, ..., wL, bL, w_target, b_target, w_sens, b_sens)
    in PyTorch convention (weights (out, in), biases (out,) or (1, out)).

    Returns kernel-ready params:
      (w1T, b1, ..., wLT, bL, w_head, b_head)
    with weights transposed to (in, out) and the fused head zero-padded to a
    128-lane-multiple output width."""
    n_hidden = (len(params) - 4) // 2
    prepped = []
    for i in range(n_hidden):
        w = jnp.asarray(params[2 * i], jnp.float32)
        b = jnp.asarray(params[2 * i + 1], jnp.float32).reshape(1, -1)
        prepped += [w.T, b]                               # (in, out), (1, out)

    wt, bt, ws, bs = params[-4:]
    wt = jnp.asarray(wt, jnp.float32)
    ws = jnp.asarray(ws, jnp.float32)
    bt = jnp.asarray(bt, jnp.float32).reshape(1, -1)
    bs = jnp.asarray(bs, jnp.float32).reshape(1, -1)

    w_head = jnp.concatenate([wt, ws], axis=0).T          # (hidden[-1], 4*z_dim)
    b_head = jnp.concatenate([bt, bs], axis=-1)           # (1, 4*z_dim)

    out_w = 4 * z_dim
    out_pad = pl.cdiv(out_w, 128) * 128                   # lane-dense output width
    pad = out_pad - out_w
    if pad:
        w_head = jnp.pad(w_head, ((0, 0), (0, pad)))
        b_head = jnp.pad(b_head, ((0, 0), (0, pad)))

    return tuple(prepped) + (w_head, b_head)


def _pick_batch_tile(batch):
    """Largest convenient batch tile; degenerates to the whole batch when small."""
    if batch <= 1024:
        return batch
    for tb in (1024, 512, 256, 128, 64, 32, 16, 8):
        if batch % tb == 0:
            return tb
    return batch


# -----------------------------------------------------------------------------
# Forward (single jit, single pallas_call)
# -----------------------------------------------------------------------------
@functools.partial(jax.jit, static_argnames=("z_dim",))
def mlp_encoder_forward(x, prepped, *, z_dim):
    """prepped = output of prepare_params. Returns the 4-tuple
    (target_mean, log_target_std, sensitive_mean, log_sensitive_std)."""
    n_hidden = (len(prepped) - 2) // 2
    batch, in_dim = x.shape
    w_head, b_head = prepped[-2], prepped[-1]
    out_pad = w_head.shape[1]

    tb = _pick_batch_tile(batch)
    grid = (batch // tb,)

    # x / out tiled along the batch; weights & biases VMEM-resident across
    # all grid steps (constant index_map -> no re-DMA).
    in_specs = [pl.BlockSpec((tb, in_dim), lambda i: (i, 0))]
    for p in prepped:
        in_specs.append(pl.BlockSpec(p.shape, lambda i: (0, 0)))
    out_spec = pl.BlockSpec((tb, out_pad), lambda i: (i, 0))

    # Advisory cost estimate for XLA's scheduler.
    flops = 0
    bytes_accessed = x.size * x.dtype.itemsize
    for i in range(n_hidden):
        w = prepped[2 * i]
        b = prepped[2 * i + 1]
        flops += 2 * batch * w.shape[0] * w.shape[1]
        bytes_accessed += (w.size + b.size) * 4
    flops += 2 * batch * w_head.shape[0] * w_head.shape[1]
    bytes_accessed += (w_head.size + b_head.size) * 4
    bytes_accessed += batch * out_pad * 4

    kernel = functools.partial(_mlp_encoder_kernel, n_hidden=n_hidden)

    head = pl.pallas_call(
        kernel,
        out_shape=jax.ShapeDtypeStruct((batch, out_pad), jnp.float32),
        grid=grid,
        in_specs=in_specs,
        out_specs=out_spec,
        compiler_params=pltpu.CompilerParams(
            dimension_semantics=("parallel",)),
        cost_estimate=pl.CostEstimate(flops=flops, transcendentals=0,
                                      bytes_accessed=bytes_accessed),
    )(x, *prepped)

    # LinearToLatentRepresentation's 4-way split — fused under jit, free slicing.
    return (head[:, 0 * z_dim:1 * z_dim],
            head[:, 1 * z_dim:2 * z_dim],
            head[:, 2 * z_dim:3 * z_dim],
            head[:, 3 * z_dim:4 * z_dim])


# -----------------------------------------------------------------------------
# Synthetic init + pure-JAX reference (PyTorch-convention params)
# -----------------------------------------------------------------------------
def init_params(key, input_dim, hidden_dims, z_dim):
    """Deterministic synthetic init mimicking nn.Linear's uniform(-1/sqrt(fan_in), ...)."""
    dims = [input_dim] + list(hidden_dims)
    params = []
    for i in range(len(dims) - 1):
        key, kw, kb = jax.random.split(key, 3)
        bound = 1.0 / jnp.sqrt(dims[i])
        w = jax.random.uniform(kw, (dims[i + 1], dims[i]), jnp.float32, -bound, bound)
        b = jax.random.uniform(kb, (1, dims[i + 1]), jnp.float32, -bound, bound)
        params += [w, b]
    # LinearToLatentRepresentation: linear_target, linear_sens -> each (2*z_dim, hidden[-1])
    for _ in range(2):
        key, kw, kb = jax.random.split(key, 3)
        bound = 1.0 / jnp.sqrt(dims[-1])
        w = jax.random.uniform(kw, (2 * z_dim, dims[-1]), jnp.float32, -bound, bound)
        b = jax.random.uniform(kb, (1, 2 * z_dim), jnp.float32, -bound, bound)
        params += [w, b]
    return tuple(params)


def reference_forward(x, params, *, z_dim):
    n_hidden = (len(params) - 4) // 2
    h = x
    for i in range(n_hidden):
        w, b = params[2 * i], params[2 * i + 1]
        h = jnp.maximum(h @ w.T + b, 0.0)
    wt, bt, ws, bs = params[-4:]
    t = h @ wt.T + bt
    s = h @ ws.T + bs
    return t[:, :z_dim], t[:, z_dim:], s[:, :z_dim], s[:, z_dim:]


if __name__ == "__main__":
    # Small shapes consistent with MLPEncoder(input_dim, hidden_dims=[64], z_dim=2).
    batch, input_dim, hidden_dims, z_dim = 8, 32, [64], 2

    key = jax.random.PRNGKey(0)
    key, kx = jax.random.split(key)
    x = jax.random.normal(kx, (batch, input_dim), jnp.float32)
    params = init_params(key, input_dim, hidden_dims, z_dim)

    # One-time parameter prep (transpose, fuse heads, pad to 128 lanes).
    prepped = prepare_params(params, z_dim)
    prepped = jax.block_until_ready(prepped)

    outs = mlp_encoder_forward(x, prepped, z_dim=z_dim)
    outs = jax.block_until_ready(outs)

    refs = reference_forward(x, params, z_dim=z_dim)
    for o, r in zip(outs, refs):
        assert o.shape == (batch, z_dim)
        assert jnp.allclose(o, r, atol=1e-5, rtol=1e-5), "mismatch vs JAX reference"

    print("KERNEL_OK")
</pallas_src>

<mosaic_0001>
module attributes {stable_mosaic.version = 11 : i64} {
  func.func @_mlp_encoder_kernel(%arg0: i32, %arg1: memref<8x32xf32, #tpu.memory_space<vmem>>, %arg2: memref<32x64xf32, #tpu.memory_space<vmem>>, %arg3: memref<1x64xf32, #tpu.memory_space<vmem>>, %arg4: memref<64x128xf32, #tpu.memory_space<vmem>>, %arg5: memref<1x128xf32, #tpu.memory_space<vmem>>, %arg6: memref<8x128xf32, #tpu.memory_space<vmem>>) attributes {dimension_semantics = [#tpu.dimension_semantics<parallel>], iteration_bounds = array<i64: 1>, scalar_prefetch = 0 : i64, scratch_operands = 0 : i64, tpu.core_type = #tpu.core_type<tc>, window_params = [{transform_indices = @transform_0, window_bounds = array<i64: 8, 32>}, {pipeline_mode = #tpu.pipeline_mode<synchronous>, transform_indices = @transform_1, window_bounds = array<i64: 32, 64>}, {pipeline_mode = #tpu.pipeline_mode<synchronous>, transform_indices = @transform_2, window_bounds = array<i64: 1, 64>}, {pipeline_mode = #tpu.pipeline_mode<synchronous>, transform_indices = @transform_3, window_bounds = array<i64: 64, 128>}, {pipeline_mode = #tpu.pipeline_mode<synchronous>, transform_indices = @transform_4, window_bounds = array<i64: 1, 128>}, {transform_indices = @transform_5, window_bounds = array<i64: 8, 128>}]} {
    %c0 = arith.constant 0 : index
    %c0_0 = arith.constant 0 : index
    %0 = vector.load %arg1[%c0, %c0_0] : memref<8x32xf32, #tpu.memory_space<vmem>>, vector<8x32xf32>
    %c0_1 = arith.constant 0 : index
    %c0_2 = arith.constant 0 : index
    %1 = vector.load %arg2[%c0_1, %c0_2] : memref<32x64xf32, #tpu.memory_space<vmem>>, vector<32x64xf32>
    %c0_3 = arith.constant 0 : index
    %c0_4 = arith.constant 0 : index
    %2 = vector.load %arg3[%c0_3, %c0_4] : memref<1x64xf32, #tpu.memory_space<vmem>>, vector<1x64xf32>
    %cst = arith.constant dense<0.000000e+00> : vector<8x64xf32>
    %3 = tpu.matmul %0, %1, %cst {dimension_numbers = #tpu.dot_dimension_numbers<[1], [0], [0], [1], [0, 0, 1, 1], [], []>} : vector<8x32xf32>, vector<32x64xf32>, vector<8x64xf32> -> vector<8x64xf32>
    %4 = vector.broadcast %2 : vector<1x64xf32> to vector<8x64xf32>
    %5 = arith.addf %3, %4 : vector<8x64xf32>
    %cst_5 = arith.constant 0.000000e+00 : f32
    %6 = vector.broadcast %cst_5 : f32 to vector<8x64xf32>
    %7 = arith.maximumf %5, %6 : vector<8x64xf32>
    %c0_6 = arith.constant 0 : index
    %c0_7 = arith.constant 0 : index
    %8 = vector.load %arg4[%c0_6, %c0_7] : memref<64x128xf32, #tpu.memory_space<vmem>>, vector<64x128xf32>
    %cst_8 = arith.constant dense<0.000000e+00> : vector<8x128xf32>
    %9 = tpu.matmul %7, %8, %cst_8 {dimension_numbers = #tpu.dot_dimension_numbers<[1], [0], [0], [1], [0, 0, 1, 1], [], []>} : vector<8x64xf32>, vector<64x128xf32>, vector<8x128xf32> -> vector<8x128xf32>
    %c0_9 = arith.constant 0 : index
    %c0_10 = arith.constant 0 : index
    %10 = vector.load %arg5[%c0_9, %c0_10] : memref<1x128xf32, #tpu.memory_space<vmem>>, vector<1x128xf32>
    %11 = vector.broadcast %10 : vector<1x128xf32> to vector<8x128xf32>
    %12 = arith.addf %9, %11 : vector<8x128xf32>
    %c0_11 = arith.constant 0 : index
    %c0_12 = arith.constant 0 : index
    %13 = vector.load %arg6[%c0_11, %c0_12] : memref<8x128xf32, #tpu.memory_space<vmem>>, vector<8x128xf32>
    tpu.vector_store %arg6[%c0_11, %c0_12], %12 {strides = array<i32>} : memref<8x128xf32, #tpu.memory_space<vmem>>, vector<8x128xf32>,
    return
  }
  func.func @transform_0(%arg0: i32) -> (i32, i32) {
    %c0_i32 = arith.constant 0 : i32
    %c0_i32_0 = arith.constant 0 : i32
    return %arg0, %c0_i32 : i32, i32
  }
  func.func @transform_1(%arg0: i32) -> (i32, i32) {
    %c0_i32 = arith.constant 0 : i32
    %c0_i32_0 = arith.constant 0 : i32
    %c0_i32_1 = arith.constant 0 : i32
    return %c0_i32, %c0_i32_0 : i32, i32
  }
  func.func @transform_2(%arg0: i32) -> (i32, i32) {
    %c0_i32 = arith.constant 0 : i32
    %c0_i32_0 = arith.constant 0 : i32
    %c0_i32_1 = arith.constant 0 : i32
    return %c0_i32, %c0_i32_0 : i32, i32
  }
  func.func @transform_3(%arg0: i32) -> (i32, i32) {
    %c0_i32 = arith.constant 0 : i32
    %c0_i32_0 = arith.constant 0 : i32
    %c0_i32_1 = arith.constant 0 : i32
    return %c0_i32, %c0_i32_0 : i32, i32
  }
  func.func @transform_4(%arg0: i32) -> (i32, i32) {
    %c0_i32 = arith.constant 0 : i32
    %c0_i32_0 = arith.constant 0 : i32
    %c0_i32_1 = arith.constant 0 : i32
    return %c0_i32, %c0_i32_0 : i32, i32
  }
  func.func @transform_5(%arg0: i32) -> (i32, i32) {
    %c0_i32 = arith.constant 0 : i32
    %c0_i32_0 = arith.constant 0 : i32
    return %arg0, %c0_i32 : i32, i32
  }
}

</mosaic_0001>

<llo_original>
// kernel: mlp_encoder_forward.1
$region0: #{mlp_encoder_forward.1}
  #allocation0 [shape = 'u32[]', space=smem, size = 0x4, offset = 0x4, fixed_abs, tag = 'smem constant byte address 0x4 - core index']
  #allocation1 [shape = 'u32[72,128]{1,0:T(1,128)}', space=vmem, size = 0x9000, scoped, tag = 'internal scratch']
  %s0 = inlined_call_operand.hbm [shape: f32[8,32], index: 0, kind: input, shape index: {}]
  %s1 = inlined_call_operand.hbm [shape: f32[32,64], index: 1, kind: input, shape index: {}]
  %s2 = inlined_call_operand.vmem [shape: f32[1,64], index: 2, kind: input, shape index: {}]
  %s3 = inlined_call_operand.hbm [shape: f32[64,128], index: 3, kind: input, shape index: {}]
  %s4 = inlined_call_operand.vmem [shape: f32[1,128], index: 4, kind: input, shape index: {}]
  %s5 = inlined_call_operand.vmem [shape: f32[8,128], index: 5, kind: output, shape index: {}]
  %s6 = sld [smem:[#allocation0]]
  $region42: #{mlp_encoder_forward.1} parent=0
    _
  %s8 = ssub.s32 1, %s6
  %s9 = scalar_select 0, %s8, %s6
  $region1: #{mlp_encoder_forward.1} parent=0
    #allocation2 [shape = 'u8[4096]{0}', space=vmem, size = 0x1000, scoped, tag = 'input window, operand 0, single buffered']
    #allocation3 [shape = 's32[1]{0}', space=sflag, size = 0x4, scoped, tag = 'scoped memory for mlp_encoder_forward.1']
    #allocation4 [shape = 'u8[16384]{0}', space=vmem, size = 0x4000, scoped, tag = 'input window, operand 1, single buffered']
    #allocation5 [shape = 's32[1]{0}', space=sflag, size = 0x4, scoped, tag = 'scoped memory for mlp_encoder_forward.1']
    #allocation6 [shape = 'u8[32768]{0}', space=vmem, size = 0x8000, scoped, tag = 'input window, operand 3, single buffered']
    %10 = vsyncpa [#allocation3], 0
    %11 = vsyncpa [#allocation5], 0
    // Predicated region
    $region2: #{mlp_encoder_forward.1} parent=1 // pred_check
      _
    $region3: #{mlp_encoder_forward.1} parent=1 // pred_check_branch
      %13 = sbr.rel (0) target = $region5
    $region4: #{mlp_encoder_forward.1} parent=1 // pred_region
      %15 = vsyncadd [#allocation3], 0
      %s17 = sshll.u32 %s0, 4
      %s18 = int_to_ptr.hbm [resolvable:$true] %s17
      %s19 = sshll.u32 [#allocation2], 4
      %s20 = int_to_ptr.vmem [resolvable:$true] %s19
      %22 = dma.hbm_to_vmem [thread:$0]  %s18, 128, %s20, [#allocation3]
    $region5: #{mlp_encoder_forward.1} parent=1 // pred_fallthru
      _
    // Predicated region
    $region6: #{mlp_encoder_forward.1} parent=1 // pred_check
      _
    $region7: #{mlp_encoder_forward.1} parent=1 // pred_check_branch
      %24 = sbr.rel (0) target = $region9
    $region8: #{mlp_encoder_forward.1} parent=1 // pred_region
      %26 = vsyncadd [#allocation5], 0
      %s27 = sshll.u32 %s1, 4
      %s28 = int_to_ptr.hbm [resolvable:$true] %s27
      %s29 = sshll.u32 [#allocation4], 4
      %s30 = int_to_ptr.vmem [resolvable:$true] %s29
      %35 = dma.hbm_to_vmem [thread:$0]  %s28, 512, %s30, [#allocation5], 128, 128, 8
    $region9: #{mlp_encoder_forward.1} parent=1 // pred_fallthru
      _
    // Predicated region
    $region10: #{mlp_encoder_forward.1} parent=1 // pred_check
      _
    $region11: #{mlp_encoder_forward.1} parent=1 // pred_check_branch
      %37 = sbr.rel (0) target = $region13
    $region12: #{mlp_encoder_forward.1} parent=1 // pred_region
      _
    $region13: #{mlp_encoder_forward.1} parent=1 // pred_fallthru
      _
    // Predicated region
    $region14: #{mlp_encoder_forward.1} parent=1 // pred_check
      _
    $region15: #{mlp_encoder_forward.1} parent=1 // pred_check_branch
      %39 = sbr.rel (0) target = $region17
    $region16: #{mlp_encoder_forward.1} parent=1 // pred_region
      %41 = vsyncadd [#allocation5], 0
      %s42 = sshll.u32 %s3, 4
      %s43 = int_to_ptr.hbm [resolvable:$true] %s42
      %s44 = sshll.u32 [#allocation6], 4
      %s45 = int_to_ptr.vmem [resolvable:$true] %s44
      %50 = dma.hbm_to_vmem [thread:$0]  %s43, 1024, %s45, [#allocation5], 128, 128, 8
    $region17: #{mlp_encoder_forward.1} parent=1 // pred_fallthru
      _
    // Predicated region
    $region18: #{mlp_encoder_forward.1} parent=1 // pred_check
      _
    $region19: #{mlp_encoder_forward.1} parent=1 // pred_check_branch
      %52 = sbr.rel (0) target = $region21
    $region20: #{mlp_encoder_forward.1} parent=1 // pred_region
      _
    $region21: #{mlp_encoder_forward.1} parent=1 // pred_fallthru
      _
    // Predicated region
    $region22: #{mlp_encoder_forward.1} parent=1 // pred_check
      _
    $region23: #{mlp_encoder_forward.1} parent=1 // pred_check_branch
      %54 = sbr.rel (0) target = $region25
    $region24: #{mlp_encoder_forward.1} parent=1 // pred_region
      %56 = dma.done [#allocation3], 128
    $region25: #{mlp_encoder_forward.1} parent=1 // pred_fallthru
      _
    // Predicated region
    $region26: #{mlp_encoder_forward.1} parent=1 // pred_check
      _
    $region27: #{mlp_encoder_forward.1} parent=1 // pred_check_branch
      %58 = sbr.rel (0) target = $region29
    $region28: #{mlp_encoder_forward.1} parent=1 // pred_region
      %60 = dma.done [#allocation5], 512
    $region29: #{mlp_encoder_forward.1} parent=1 // pred_fallthru
      _
    // Predicated region
    $region30: #{mlp_encoder_forward.1} parent=1 // pred_check
      _
    $region31: #{mlp_encoder_forward.1} parent=1 // pred_check_branch
      %62 = sbr.rel (0) target = $region33
    $region32: #{mlp_encoder_forward.1} parent=1 // pred_region
      %64 = dma.done [#allocation5], 1024
    $region33: #{mlp_encoder_forward.1} parent=1 // pred_fallthru
      _
    %v65 = vld [vmem:[#allocation2] sm:$0xff]
    %v66 = vld [vmem:[#allocation4] sm:$0xff]
    %v67 = vld [vmem:[#allocation4 + $0x8] sm:$0xff]
    %v68 = vld [vmem:[#allocation4 + $0x10] sm:$0xff]
    %v69 = vld [vmem:[#allocation4 + $0x18] sm:$0xff]
    %v70 = vld [vmem:[%s2] sm:$0x1]
    %v72 = vperm.slane %v70, 0
    %vm74 = vcmask 261120
    %v76 = vsel %vm74, %v65, 0
    %78 = vmatpush.msra.mxu0 0.0
    %79 = vmatpush.msra.mxu0 0.0
    %80 = vmatpush.msra.mxu0 0.0
    %81 = vmatpush.msra.mxu0 0.0
    %82 = vmatpush.msra.mxu0 0.0
    %83 = vmatpush.msra.mxu0 0.0
    %84 = vmatpush.msra.mxu0 0.0
    %85 = vmatpush.msra.mxu0 0.0
    %86 = vmatpush.msra.mxu0 0.0
    %87 = vmatpush.msra.mxu0 0.0
    %88 = vmatpush.msra.mxu0 0.0
    %89 = vmatpush.msra.mxu0 0.0
    %90 = vmatpush.msra.mxu0 %v69
    %91 = vmatpush.msra.mxu0 %v68
    %92 = vmatpush.msra.mxu0 %v67
    %93 = vmatpush.msra.mxu0 %v66
    %94 = vmatmul.f32.gmra.mxu0 %v76
    %v95 = vpop.f32.mrf.mxu0
    %v96 = vadd.f32 %v72, %v95
    %97 = vdwg.mxu0
    %v98 = vmax.f32 %v96, 0.0
    %v99 = vld [vmem:[#allocation6] sm:$0xff]
    %v100 = vld [vmem:[#allocation6 + $0x8] sm:$0xff]
    %v101 = vld [vmem:[#allocation6 + $0x10] sm:$0xff]
    %v102 = vld [vmem:[#allocation6 + $0x18] sm:$0xff]
    %v103 = vld [vmem:[#allocation6 + $0x20] sm:$0xff]
    %v104 = vld [vmem:[#allocation6 + $0x28] sm:$0xff]
    %v105 = vld [vmem:[#allocation6 + $0x30] sm:$0xff]
    %v106 = vld [vmem:[#allocation6 + $0x38] sm:$0xff]
    %v107 = vld [vmem:[%s4] sm:$0x1]
    %v109 = vperm.slane %v107, 0
    %vm111 = vcmask 523264
    %v113 = vsel %vm111, %v98, 0
    %115 = vmatpush.msra.mxu0 0.0
    %116 = vmatpush.msra.mxu0 0.0
    %117 = vmatpush.msra.mxu0 0.0
    %118 = vmatpush.msra.mxu0 0.0
    %119 = vmatpush.msra.mxu0 0.0
    %120 = vmatpush.msra.mxu0 0.0
    %121 = vmatpush.msra.mxu0 0.0
    %122 = vmatpush.msra.mxu0 0.0
    %123 = vmatpush.msra.mxu0 %v106
    %124 = vmatpush.msra.mxu0 %v105
    %125 = vmatpush.msra.mxu0 %v104
    %126 = vmatpush.msra.mxu0 %v103
    %127 = vmatpush.msra.mxu0 %v102
    %128 = vmatpush.msra.mxu0 %v101
    %129 = vmatpush.msra.mxu0 %v100
    %130 = vmatpush.msra.mxu0 %v99
    %131 = vmatmul.f32.gmra.mxu0 %v113
    %v132 = vpop.f32.mrf.mxu0
    %v133 = vadd.f32 %v109, %v132
    %134 = vdwg.mxu0
    %135 = vst [vmem:[%s5] sm:$0xff] %v133
    // Predicated region
    $region34: #{mlp_encoder_forward.1} parent=1 // pred_check
      _
    $region35: #{mlp_encoder_forward.1} parent=1 // pred_check_branch
      %137 = sbr.rel (0) target = $region37
    $region36: #{mlp_encoder_forward.1} parent=1 // pred_region
      _
    $region37: #{mlp_encoder_forward.1} parent=1 // pred_fallthru
      _
    // Predicated region
    $region38: #{mlp_encoder_forward.1} parent=1 // pred_check
      _
    $region39: #{mlp_encoder_forward.1} parent=1 // pred_check_branch
      %139 = sbr.rel (0) target = $region41
    $region40: #{mlp_encoder_forward.1} parent=1 // pred_region
      _
    $region41: #{mlp_encoder_forward.1} parent=1 // pred_fallthru
      _
    %140 = vsyncpa [#allocation3], 1
    %141 = vsyncpa [#allocation5], 1

</llo_original>
